<compile_context>
chip_gen: v6e
topology: v6e:2x2x1
jax: 0.10.0
libtpu: 0.0.40
codegen_flags: <defaults>
</compile_context>

<pallas_src>
import jax
import jax.numpy as jnp
from jax.experimental import pallas as pl
from jax.experimental.pallas import tpu as pltpu


def _round_up(n, m):
    return ((n + m - 1) // m) * m


def multimodal_head_kernel(xy_ref, w_ref, b_ref, o_ref):
    # One fused (bb, D) @ (D, Cp) MXU matmul with f32 accumulation.
    logits = jnp.dot(xy_ref[...], w_ref[...], preferred_element_type=jnp.float32)
    logits = logits + b_ref[...]              # (1, Cp) f32 bias, broadcasts over rows
    # Numerically stable softmax over the class (lane) dim, all in f32.
    m = jnp.max(logits, axis=-1, keepdims=True)
    e = jnp.exp(logits - m)
    denom = jnp.sum(e, axis=-1, keepdims=True)
    # EUP reciprocal (free slot after the exp) instead of a VPU divide sequence.
    o_ref[...] = (e * pl.reciprocal(denom, approx=True)).astype(o_ref.dtype)


def prepare_head_params(weight, bias, dx, dy, *, compute_dtype=jnp.bfloat16):
    """One-time parameter prep (hoisted out of the per-call path).

    weight: (C, Dx+Dy) PyTorch nn.Linear layout; bias: (C,).
    Returns (w_t, b_row, C): pre-transposed (D, Cp) compute-dtype weight and a
    (1, Cp) f32 bias row, class dim padded to a multiple of 128 (padded bias
    entries are -inf so softmax gives them zero mass).
    """
    C, D = weight.shape
    assert D == dx + dy
    Cp = _round_up(C, 128)
    w_t = jnp.transpose(weight).astype(compute_dtype)          # (D, C)
    b_row = bias.astype(jnp.float32)
    if Cp != C:
        w_t = jnp.pad(w_t, ((0, 0), (0, Cp - C)))
        b_row = jnp.pad(b_row, (0, Cp - C), constant_values=-jnp.inf)
    return w_t, b_row.reshape(1, Cp), C


def multimodal_head(x, y, w_t, b_row, num_classes, *, block_b=256,
                    compute_dtype=jnp.bfloat16):
    """x: (B, Dx), y: (B, Dy) modality features; w_t: (D, Cp); b_row: (1, Cp)."""
    B = x.shape[0]
    D, Cp = w_t.shape
    out_dtype = x.dtype

    # Fuse the two partial matmuls into a single K=D dot: concat once here.
    xy = jnp.concatenate([x, y], axis=-1).astype(compute_dtype)       # (B, D)

    # Batch tile: multiple of 8 (sublane), clamped to B; pad B if needed.
    bb = max(8, min(_round_up(block_b, 8), _round_up(B, 8)))
    Bp = _round_up(B, bb)
    if Bp != B:
        xy = jnp.pad(xy, ((0, Bp - B), (0, 0)))
    grid = (Bp // bb,)

    # VMEM budget: resident weight/bias + double-buffered act/out tiles + f32 temps.
    cbytes = jnp.dtype(compute_dtype).itemsize
    obytes = jnp.dtype(out_dtype).itemsize
    budget = (D * Cp * cbytes + Cp * 4
              + 2 * bb * D * cbytes
              + 2 * bb * Cp * obytes
              + 4 * bb * Cp * 4)
    vmem_limit = int(min(max(budget + (4 << 20), 16 << 20), 48 << 20))

    out = pl.pallas_call(
        multimodal_head_kernel,
        out_shape=jax.ShapeDtypeStruct((Bp, Cp), out_dtype),
        grid=grid,
        in_specs=[
            pl.BlockSpec((bb, D), lambda i: (i, 0)),       # pipelined batch tiles
            pl.BlockSpec((D, Cp), lambda i: (0, 0)),       # weight: VMEM-resident
            pl.BlockSpec((1, Cp), lambda i: (0, 0)),       # bias:   VMEM-resident
        ],
        out_specs=pl.BlockSpec((bb, Cp), lambda i: (i, 0)),
        compiler_params=pltpu.CompilerParams(
            dimension_semantics=("parallel",),
            vmem_limit_bytes=vmem_limit,
        ),
    )(xy, w_t, b_row)

    # Strip batch / class padding.
    return out[:B, :num_classes]


if __name__ == "__main__":
    # Small shapes consistent with the module: two modality feature vectors.
    B = 32
    dim_in = (32, 32)          # (visual, audio) feature dims
    num_classes = 128
    D = sum(dim_in)

    key = jax.random.PRNGKey(0)
    kx, ky, kw, kb = jax.random.split(key, 4)
    x = jax.random.normal(kx, (B, dim_in[0]), dtype=jnp.float32)
    y = jax.random.normal(ky, (B, dim_in[1]), dtype=jnp.float32)
    # Deterministic nn.Linear-style init: U(-1/sqrt(fan_in), 1/sqrt(fan_in)).
    bound = 1.0 / (D ** 0.5)
    weight = jax.random.uniform(kw, (num_classes, D), jnp.float32, -bound, bound)
    bias = jax.random.uniform(kb, (num_classes,), jnp.float32, -bound, bound)

    # Params prepped once (transpose / cast / pad), not per forward call.
    w_t, b_row, C = prepare_head_params(weight, bias, dim_in[0], dim_in[1])
    # Small block_b so the toy run exercises a multi-step pipelined batch grid.
    out = multimodal_head(x, y, w_t, b_row, C, block_b=8)
    out = jax.block_until_ready(out)

    # Plain-JAX f32 reference of the fused head (eval-mode softmax).
    ref = jax.nn.softmax(jnp.concatenate([x, y], axis=-1) @ weight.T + bias, axis=-1)
    assert out.shape == (B, num_classes)
    # bf16 matmul + approx reciprocal are intentional low-precision compute;
    # softmax outputs are in [0, 1], so a 1e-2 tolerance vs the f32 reference
    # bounds the quantization error comfortably.
    err = float(jnp.max(jnp.abs(out.astype(jnp.float32) - ref)))
    assert jnp.allclose(out, ref, atol=1e-2, rtol=1e-2), err

    print("KERNEL_OK")
</pallas_src>

<mosaic_0001>
module attributes {stable_mosaic.version = 11 : i64} {
  func.func @multimodal_head_kernel(%arg0: i32, %arg1: memref<8x64xbf16, #tpu.memory_space<vmem>>, %arg2: memref<64x128xbf16, #tpu.memory_space<vmem>>, %arg3: memref<1x128xf32, #tpu.memory_space<vmem>>, %arg4: memref<8x128xf32, #tpu.memory_space<vmem>>) attributes {dimension_semantics = [#tpu.dimension_semantics<parallel>], iteration_bounds = array<i64: 4>, scalar_prefetch = 0 : i64, scratch_operands = 0 : i64, tpu.core_type = #tpu.core_type<tc>, window_params = [{transform_indices = @transform_0, window_bounds = array<i64: 8, 64>}, {pipeline_mode = #tpu.pipeline_mode<synchronous>, transform_indices = @transform_1, window_bounds = array<i64: 64, 128>}, {pipeline_mode = #tpu.pipeline_mode<synchronous>, transform_indices = @transform_2, window_bounds = array<i64: 1, 128>}, {transform_indices = @transform_3, window_bounds = array<i64: 8, 128>}]} {
    %c0 = arith.constant 0 : index
    %c0_0 = arith.constant 0 : index
    %0 = vector.load %arg1[%c0, %c0_0] : memref<8x64xbf16, #tpu.memory_space<vmem>>, vector<8x64xbf16>
    %c0_1 = arith.constant 0 : index
    %c0_2 = arith.constant 0 : index
    %1 = vector.load %arg2[%c0_1, %c0_2] : memref<64x128xbf16, #tpu.memory_space<vmem>>, vector<64x128xbf16>
    %cst = arith.constant dense<0.000000e+00> : vector<8x128xf32>
    %2 = tpu.matmul %0, %1, %cst {dimension_numbers = #tpu.dot_dimension_numbers<[1], [0], [0], [1], [0, 0, 1, 1], [], []>} : vector<8x64xbf16>, vector<64x128xbf16>, vector<8x128xf32> -> vector<8x128xf32>
    %c0_3 = arith.constant 0 : index
    %c0_4 = arith.constant 0 : index
    %3 = vector.load %arg3[%c0_3, %c0_4] : memref<1x128xf32, #tpu.memory_space<vmem>>, vector<1x128xf32>
    %4 = vector.broadcast %3 : vector<1x128xf32> to vector<8x128xf32>
    %5 = arith.addf %2, %4 : vector<8x128xf32>
    %cst_5 = arith.constant dense<0xFF800000> : vector<8xf32>
    %6 = vector.multi_reduction <maximumf>, %5, %cst_5 [1] : vector<8x128xf32> to vector<8xf32>
    %7 = vector.shape_cast %6 : vector<8xf32> to vector<8x1xf32>
    %8 = vector.broadcast %7 : vector<8x1xf32> to vector<8x128xf32>
    %9 = arith.subf %5, %8 : vector<8x128xf32>
    %10 = math.exp %9 : vector<8x128xf32>
    %cst_6 = arith.constant dense<0.000000e+00> : vector<8xf32>
    %11 = vector.multi_reduction <add>, %10, %cst_6 [1] : vector<8x128xf32> to vector<8xf32>
    %12 = vector.shape_cast %11 : vector<8xf32> to vector<8x1xf32>
    %13 = tpu.reciprocal %12 {approx = true} : vector<8x1xf32> -> vector<8x1xf32>
    %14 = vector.broadcast %13 : vector<8x1xf32> to vector<8x128xf32>
    %15 = arith.mulf %10, %14 : vector<8x128xf32>
    %c0_7 = arith.constant 0 : index
    %c0_8 = arith.constant 0 : index
    %16 = vector.load %arg4[%c0_7, %c0_8] : memref<8x128xf32, #tpu.memory_space<vmem>>, vector<8x128xf32>
    tpu.vector_store %arg4[%c0_7, %c0_8], %15 {strides = array<i32>} : memref<8x128xf32, #tpu.memory_space<vmem>>, vector<8x128xf32>,
    return
  }
  func.func @transform_0(%arg0: i32) -> (i32, i32) {
    %c0_i32 = arith.constant 0 : i32
    %c0_i32_0 = arith.constant 0 : i32
    return %arg0, %c0_i32 : i32, i32
  }
  func.func @transform_1(%arg0: i32) -> (i32, i32) {
    %c0_i32 = arith.constant 0 : i32
    %c0_i32_0 = arith.constant 0 : i32
    %c0_i32_1 = arith.constant 0 : i32
    return %c0_i32, %c0_i32_0 : i32, i32
  }
  func.func @transform_2(%arg0: i32) -> (i32, i32) {
    %c0_i32 = arith.constant 0 : i32
    %c0_i32_0 = arith.constant 0 : i32
    %c0_i32_1 = arith.constant 0 : i32
    return %c0_i32, %c0_i32_0 : i32, i32
  }
  func.func @transform_3(%arg0: i32) -> (i32, i32) {
    %c0_i32 = arith.constant 0 : i32
    %c0_i32_0 = arith.constant 0 : i32
    return %arg0, %c0_i32 : i32, i32
  }
}

</mosaic_0001>

<llo_original>
// kernel: tpu_custom_call.1
$region0: #{tpu_custom_call.1}
  #allocation0 [shape = 'u32[]', space=smem, size = 0x4, offset = 0x4, fixed_abs, tag = 'smem constant byte address 0x4 - core index']
  #allocation1 [shape = 'u32[144,128]{1,0:T(1,128)}', space=vmem, size = 0x12000, scoped, tag = 'internal scratch']
  %s0 = inlined_call_operand.hbm [shape: bf16[32,64], index: 0, kind: input, shape index: {}]
  %s1 = inlined_call_operand.hbm [shape: bf16[64,128], index: 1, kind: input, shape index: {}]
  %s2 = inlined_call_operand.vmem [shape: f32[1,128], index: 2, kind: input, shape index: {}]
  %s3 = inlined_call_operand.hbm [shape: f32[32,128], index: 3, kind: output, shape index: {}]
  %s4 = sld [smem:[#allocation0]]
  $region53: #{tpu_custom_call.1} parent=0
    _
  %s6 = ssub.s32 1, %s4
  %s7 = scalar_select 0, %s6, %s4
  $region1: #{tpu_custom_call.1} parent=0
    #allocation2 [shape = 'u8[4096]{0}', space=vmem, size = 0x1000, scoped, tag = 'input window, operand 0']
    #allocation3 [shape = 's32[2]{0}', space=sflag, size = 0x8, scoped, tag = 'scoped memory for tpu_custom_call.1']
    #allocation4 [shape = 's32[2]{0}', space=sflag, size = 0x8, scoped, tag = 'scoped memory for tpu_custom_call.1']
    #allocation5 [shape = 'u8[16384]{0}', space=vmem, size = 0x4000, scoped, tag = 'input window, operand 1, single buffered']
    #allocation6 [shape = 's32[1]{0}', space=sflag, size = 0x4, scoped, tag = 'scoped memory for tpu_custom_call.1']
    #allocation7 [shape = 'u8[8192]{0}', space=vmem, size = 0x2000, scoped, tag = 'output window, operand 0']
    %8 = vsyncpa [#allocation3], 0
    %s9 = scalar_lea.sflag [#allocation3], 1
    %10 = vsyncpa %s9, 0
    %11 = vsyncpa [#allocation6], 0
    %12 = vsyncpa [#allocation4], 0
    %s13 = scalar_lea.sflag [#allocation4], 1
    %14 = vsyncpa %s13, 0
    loop: start=0, step=1, limit=6
    $region2: #{tpu_custom_call.1} parent=1 // loop_pre_header
      _
    $region3: #{tpu_custom_call.1} parent=1 // loop_header
      %s16 = sphi 0, %s20
      %p17 = scmp.ge.s32.totalorder %s16, 6
      %s26 = sphi 0, %s28
      %s29 = sphi 0, %s26
      %s30 = sphi 0, %s29
      %s46 = sphi 0, %s30
      %s50 = sphi 0, %s50
      %s52 = sphi 0, %s50
      %s53 = sphi 0, %s52
      %s67 = sphi 0, %s53
      %s71 = sphi 0, %s71
      %s73 = sphi 0, %s71
      %s74 = sphi 0, %s73
      %s88 = sphi 0, %s74
      %s94 = sphi 0, %s96
      %s97 = sphi 0, %s94
      %s98 = sphi 0, %s97
      %s114 = sphi 0, %s98
    $region4: #{tpu_custom_call.1} parent=1 // loop_header_branch
      %19 = sbr.rel (%p17) target = $region8
    $region5: #{tpu_custom_call.1} parent=1 // loop_body
      %s21 = ssub.s32 %s16, 1
      %s22 = ssub.s32 %s16, 2
      %s23 = sadd.s32 %s16, 1
      %s24 = ssub.s32 %s16, %s23
      %p25 = scmp.eq.s32.totalorder %s24, 0
      %s27 = sadd.s32 %s26, 1
      %s28 = scalar_select %p25, %s26, %s27
      %p31 = pneg %p25
      %p32 = scmp.eq.s32.totalorder %s16, 3
      %p33 = por %p31, %p32
      %p34 = scmp.ne.s32.totalorder %s26, %s29
      %p35 = scmp.eq.s32.totalorder %s16, 0
      %p36 = por %p34, %p35
      %p37 = scmp.ne.s32.totalorder %s26, %s29
      %p38 = scmp.eq.s32.totalorder %s21, 3
      %p39 = por %p37, %p38
      %p40 = scmp.ne.s32.totalorder %s29, %s30
      %p41 = scmp.eq.s32.totalorder %s21, 0
      %p42 = por %p40, %p41
      %p43 = scmp.ne.s32.totalorder %s29, %s30
      %p44 = scmp.eq.s32.totalorder %s22, 3
      %p45 = por %p43, %p44
      %p47 = scmp.ne.s32.totalorder %s30, %s46
      %p48 = scmp.eq.s32.totalorder %s22, 0
      %p49 = por %p47, %p48
      %s51 = sadd.s32 %s50, 1
      %p54 = scmp.eq.s32.totalorder %s16, 3
      %p55 = scmp.ne.s32.totalorder %s50, %s52
      %p56 = scmp.eq.s32.totalorder %s16, 0
      %p57 = por %p55, %p56
      %p58 = scmp.ne.s32.totalorder %s50, %s52
      %p59 = scmp.eq.s32.totalorder %s21, 3
      %p60 = por %p58, %p59
      %p61 = scmp.ne.s32.totalorder %s52, %s53
      %p62 = scmp.eq.s32.totalorder %s21, 0
      %p63 = por %p61, %p62
      %p64 = scmp.ne.s32.totalorder %s52, %s53
      %p65 = scmp.eq.s32.totalorder %s22, 3
      %p66 = por %p64, %p65
      %p68 = scmp.ne.s32.totalorder %s53, %s67
      %p69 = scmp.eq.s32.totalorder %s22, 0
      %p70 = por %p68, %p69
      %s72 = sadd.s32 %s71, 1
      %p75 = scmp.eq.s32.totalorder %s16, 3
      %p76 = scmp.ne.s32.totalorder %s71, %s73
      %p77 = scmp.eq.s32.totalorder %s16, 0
      %p78 = por %p76, %p77
      %p79 = scmp.ne.s32.totalorder %s71, %s73
      %p80 = scmp.eq.s32.totalorder %s21, 3
      %p81 = por %p79, %p80
      %p82 = scmp.ne.s32.totalorder %s73, %s74
      %p83 = scmp.eq.s32.totalorder %s21, 0
      %p84 = por %p82, %p83
      %p85 = scmp.ne.s32.totalorder %s73, %s74
      %p86 = scmp.eq.s32.totalorder %s22, 3
      %p87 = por %p85, %p86
      %p89 = scmp.ne.s32.totalorder %s74, %s88
      %p90 = scmp.eq.s32.totalorder %s22, 0
      %p91 = por %p89, %p90
      %s92 = ssub.s32 %s16, %s23
      %p93 = scmp.eq.s32.totalorder %s92, 0
      %s95 = sadd.s32 %s94, 1
      %s96 = scalar_select %p93, %s94, %s95
      %p99 = pneg %p93
      %p100 = scmp.eq.s32.totalorder %s16, 3
      %p101 = por %p99, %p100
      %p102 = scmp.ne.s32.totalorder %s94, %s97
      %p103 = scmp.eq.s32.totalorder %s16, 0
      %p104 = por %p102, %p103
      %p105 = scmp.ne.s32.totalorder %s94, %s97
      %p106 = scmp.eq.s32.totalorder %s21, 3
      %p107 = por %p105, %p106
      %p108 = scmp.ne.s32.totalorder %s97, %s98
      %p109 = scmp.eq.s32.totalorder %s21, 0
      %p110 = por %p108, %p109
      %p111 = scmp.ne.s32.totalorder %s97, %s98
      %p112 = scmp.eq.s32.totalorder %s22, 3
      %p113 = por %p111, %p112
      %p115 = scmp.ne.s32.totalorder %s98, %s114
      %p116 = scmp.eq.s32.totalorder %s22, 0
      %p117 = por %p115, %p116
      %p118 = scmp.le.s32.totalorder 1, %s16
      %p119 = scmp.lt.s32.totalorder %s16, 5
      %p120 = pnand %p118, %p119
      %p121 = pneg %p120
      // Predicated region
      $region9: #{tpu_custom_call.1} parent=5 // pred_check
        _
      $region10: #{tpu_custom_call.1} parent=5 // pred_check_branch
        %123 = sbr.rel (%p120) target = $region12
      $region11: #{tpu_custom_call.1} parent=5 // pred_region
        %s124 = ssub.s32 %s16, 1
        // Predicated region
        $region13: #{tpu_custom_call.1} parent=11 // pred_check
          %p125 = pneg %p63
        $region14: #{tpu_custom_call.1} parent=11 // pred_check_branch
          %127 = sbr.rel (%p125) target = $region16
        $region15: #{tpu_custom_call.1} parent=11 // pred_region
          %s129 = ssub.s32 512, 512
          %130 = vsyncadd [#allocation6], %s129
          %s131 = sshll.u32 [#allocation5], 4
          %s132 = int_to_ptr.vmem [resolvable:$true] %s131
          %137 = dma.hbm_to_vmem [thread:$0]  %s1, 512, %s132, [#allocation6], 64, 64, 4
        $region16: #{tpu_custom_call.1} parent=11 // pred_fallthru
          _
        // Predicated region
        $region17: #{tpu_custom_call.1} parent=11 // pred_check
          %p138 = pneg %p84
        $region18: #{tpu_custom_call.1} parent=11 // pred_check_branch
          %140 = sbr.rel (%p138) target = $region20
        $region19: #{tpu_custom_call.1} parent=11 // pred_region
          _
        $region20: #{tpu_custom_call.1} parent=11 // pred_fallthru
          _
      $region12: #{tpu_custom_call.1} parent=5 // pred_fallthru
        _
      %p141 = scmp.lt.s32.totalorder %s16, 4
      // Predicated region
      $region21: #{tpu_custom_call.1} parent=5 // pred_check
        %p142 = pneg %p141
      $region22: #{tpu_custom_call.1} parent=5 // pred_check_branch
        %144 = sbr.rel (%p142) target = $region24
      $region23: #{tpu_custom_call.1} parent=5 // pred_region
        // Predicated region
        $region25: #{tpu_custom_call.1} parent=23 // pred_check
          %p145 = pneg %p36
        $region26: #{tpu_custom_call.1} parent=23 // pred_check_branch
          %147 = sbr.rel (%p145) target = $region28
        $region27: #{tpu_custom_call.1} parent=23 // pred_region
          %s148 = sand.u32 %s26, 1
          %s149 = scalar_lea.sflag [#allocation3], %s148
          %s150 = sand.u32 %s26, 1
          %s151 = smul.addr %s150, 4
          %s152 = scalar_lea.vmem [#allocation2], %s151
          %s154 = ssub.s32 64, 64
          %155 = vsyncadd %s149, %s154
          %s156 = smul.addr %s16, 64
          %s157 = scalar_lea.hbm %s0, %s156
          %s159 = sshll.u32 %s152, 4
          %s160 = int_to_ptr.vmem [resolvable:$true] %s159
          %162 = dma.hbm_to_vmem [thread:$0]  %s157, 64, %s160, %s149
        $region28: #{tpu_custom_call.1} parent=23 // pred_fallthru
          _
      $region24: #{tpu_custom_call.1} parent=5 // pred_fallthru
        _
      %p163 = scmp.le.s32.totalorder 1, %s16
      %p164 = scmp.lt.s32.totalorder %s16, 5
      %p165 = pnand %p163, %p164
      %p166 = pneg %p165
      // Predicated region
      $region29: #{tpu_custom_call.1} parent=5 // pred_check
        _
      $region30: #{tpu_custom_call.1} parent=5 // pred_check_branch
        %168 = sbr.rel (%p165) target = $region32
      $region31: #{tpu_custom_call.1} parent=5 // pred_region
        %s169 = ssub.s32 %s16, 1
        %s170 = sand.u32 %s29, 1
        %s171 = scalar_lea.sflag [#allocation3], %s170
        %s172 = sand.u32 %s29, 1
        %s173 = smul.addr %s172, 4
        %s174 = scalar_lea.vmem [#allocation2], %s173
        // Predicated region
        $region33: #{tpu_custom_call.1} parent=31 // pred_check
          %p175 = pneg %p42
        $region34: #{tpu_custom_call.1} parent=31 // pred_check_branch
          %177 = sbr.rel (%p175) target = $region36
        $region35: #{tpu_custom_call.1} parent=31 // pred_region
          %178 = dma.done %s171, 64
        $region36: #{tpu_custom_call.1} parent=31 // pred_fallthru
          _
        // Predicated region
        $region37: #{tpu_custom_call.1} parent=31 // pred_check
          %p179 = pneg %p63
        $region38: #{tpu_custom_call.1} parent=31 // pred_check_branch
          %181 = sbr.rel (%p179) target = $region40
        $region39: #{tpu_custom_call.1} parent=31 // pred_region
          %182 = dma.done [#allocation6], 512
        $region40: #{tpu_custom_call.1} parent=31 // pred_fallthru
          _
        %s183 = sand.u32 %s29, 1
        %s184 = scalar_lea.sflag [#allocation3], %s183
        %s185 = sand.u32 %s29, 1
        %s186 = smul.addr %s185, 4
        %s187 = scalar_lea.vmem [#allocation2], %s186
        %p188 = pneg %p42
        %p189 = pneg %p39
        %p190 = pneg %p63
        %p191 = pneg %p60
        %p192 = pneg %p84
        %p193 = pneg %p81
        %p194 = pneg %p110
        %p195 = pneg %p107
        %s196 = sand.u32 %s97, 1
        %s197 = scalar_lea.sflag [#allocation4], %s196
        %s198 = sand.u32 %s97, 1
        %s199 = smul.addr %s198, 8
        %s200 = scalar_lea.vmem [#allocation7], %s199
        %v202 = vld [vmem:[%s174] sm:$0xf]
        %v203 = vld [vmem:[#allocation5] sm:$0xf]
        %v204 = vld [vmem:[#allocation5 + $0x4] sm:$0xf]
        %v205 = vld [vmem:[#allocation5 + $0x8] sm:$0xf]
        %v206 = vld [vmem:[#allocation5 + $0xc] sm:$0xf]
        %v207 = vld [vmem:[#allocation5 + $0x10] sm:$0xf]
        %v208 = vld [vmem:[#allocation5 + $0x14] sm:$0xf]
        %v209 = vld [vmem:[#allocation5 + $0x18] sm:$0xf]
        %v210 = vld [vmem:[#allocation5 + $0x1c] sm:$0xf]
        %v211 = vld [vmem:[%s2] sm:$0x1]
        %v213 = vlaneseq
        %v214 = vshrl.u32 %v213, 7
        %v215 = vsub.s32 0, %v214
        %v216 = vrot.slane %v211, %v215
        %v226 = vunpack.c.l.b16 %v203
        %v227 = vunpack.c.l.b16 %v204
        %v228 = vunpack.c.l.b16 %v205
        %v229 = vunpack.c.l.b16 %v206
        %v230 = vunpack.c.l.b16 %v207
        %v231 = vunpack.c.l.b16 %v208
        %v232 = vunpack.c.l.b16 %v209
        %v233 = vunpack.c.l.b16 %v210
        %v234 = vpack.c.b16 %v227, %v226
        %v235 = vpack.c.b16 %v229, %v228
        %v236 = vpack.c.b16 %v231, %v230
        %v237 = vpack.c.b16 %v233, %v232
        %vm242 = vcmask 523264
        %v244 = vsel %vm242, %v202, 0
        %246 = vmatprep.subr.bf16.mxu0 0
        %247 = vmatpush1.bf16.msra.mxu0 0
        %248 = vmatprep.subr.bf16.mxu0 0
        %249 = vmatpush1.bf16.msra.mxu0 0
        %250 = vmatprep.subr.bf16.mxu0 0
        %251 = vmatpush1.bf16.msra.mxu0 0
        %252 = vmatprep.subr.bf16.mxu0 0
        %253 = vmatpush1.bf16.msra.mxu0 0
        %254 = vmatprep.subr.bf16.mxu0 0
        %255 = vmatpush1.bf16.msra.mxu0 %v237
        %256 = vmatprep.subr.bf16.mxu0 0
        %257 = vmatpush1.bf16.msra.mxu0 %v236
        %258 = vmatprep.subr.bf16.mxu0 0
        %259 = vmatpush1.bf16.msra.mxu0 %v235
        %260 = vmatprep.subr.bf16.mxu0 0
        %261 = vmatpush1.bf16.msra.mxu0 %v234
        %262 = vmatprep.subr.bf16.mxu0 0
        %263 = vmatpush2.bf16.msra.mxu0 0
        %264 = vmatprep.subr.bf16.mxu0 0
        %265 = vmatpush2.bf16.msra.mxu0 0
        %266 = vmatprep.subr.bf16.mxu0 0
        %267 = vmatpush2.bf16.msra.mxu0 0
        %268 = vmatprep.subr.bf16.mxu0 0
        %269 = vmatpush2.bf16.msra.mxu0 0
        %270 = vmatprep.subr.bf16.mxu0 0
        %271 = vmatpush2.bf16.msra.mxu0 0
        %272 = vmatprep.subr.bf16.mxu0 0
        %273 = vmatpush2.bf16.msra.mxu0 0
        %274 = vmatprep.subr.bf16.mxu0 0
        %275 = vmatpush2.bf16.msra.mxu0 0
        %276 = vmatprep.subr.bf16.mxu0 0
        %277 = vmatpush2.bf16.msra.mxu0 0
        %278 = vmatprep.mubr.bf16.mxu0 0
        %279 = vmatmul.mubr.bf16.gmra.mxu0 %v244
        %v280 = vpop.f32.mrf.mxu0
        %v281 = vadd.f32 %v216, %v280
        %v282 = vpop.f32.mrf.mxu0
        %v283 = vpop.f32.mrf.mxu0
        %v284 = vpop.f32.mrf.mxu0
        %285 = vdwg.mxu0
        %286 = vmax.xlane.f32.xlu0 %v281
        %v287 = vpop.xlane.xlu0 %286
        %v288 = vsub.f32 %v281, %v287
        %v289 = vmul.f32 %v288, 1.442695
        %v290 = vpow.pop %v289
        %291 = vadd.xlane.f32.xlu0 %v290
        %v292 = vpop.xlane.xlu0 %291
        %v293 = vrcp.pop %v292
        %v294 = vmul.f32 %v290, %v293
        %295 = vst [vmem:[%s200] sm:$0xff] %v294
        %s296 = sand.u32 %s97, 1
        %s297 = scalar_lea.sflag [#allocation4], %s296
        %s298 = sand.u32 %s97, 1
        %s299 = smul.addr %s298, 8
        %s300 = scalar_lea.vmem [#allocation7], %s299
        // Predicated region
        $region41: #{tpu_custom_call.1} parent=31 // pred_check
          %p301 = pneg %p107
        $region42: #{tpu_custom_call.1} parent=31 // pred_check_branch
          %303 = sbr.rel (%p301) target = $region44
        $region43: #{tpu_custom_call.1} parent=31 // pred_region
          %s305 = ssub.s32 128, 128
          %306 = vsyncadd %s297, %s305
          %s307 = smul.addr %s21, 128
          %s308 = scalar_lea.hbm %s3, %s307
          %s310 = sshll.u32 %s300, 4
          %s311 = int_to_ptr.vmem [resolvable:$true] %s310
          %313 = dma.vmem_to_hbm [thread:$0]  %s311, 128, %s308, %s297
        $region44: #{tpu_custom_call.1} parent=31 // pred_fallthru
          _
      $region32: #{tpu_custom_call.1} parent=5 // pred_fallthru
        _
      %p314 = scmp.le.s32.totalorder 2, %s16
      // Predicated region
      $region45: #{tpu_custom_call.1} parent=5 // pred_check
        %p315 = pneg %p314
      $region46: #{tpu_custom_call.1} parent=5 // pred_check_branch
        %317 = sbr.rel (%p315) target = $region48
      $region47: #{tpu_custom_call.1} parent=5 // pred_region
        %s318 = ssub.s32 %s16, 2
        // Predicated region
        $region49: #{tpu_custom_call.1} parent=47 // pred_check
          %p319 = pneg %p113
        $region50: #{tpu_custom_call.1} parent=47 // pred_check_branch
          %321 = sbr.rel (%p319) target = $region52
        $region51: #{tpu_custom_call.1} parent=47 // pred_region
          %s322 = sand.u32 %s98, 1
          %s323 = scalar_lea.sflag [#allocation4], %s322
          %s324 = sand.u32 %s98, 1
          %s325 = smul.addr %s324, 8
          %s326 = scalar_lea.vmem [#allocation7], %s325
          %327 = dma.done %s323, 128
        $region52: #{tpu_custom_call.1} parent=47 // pred_fallthru
          _
      $region48: #{tpu_custom_call.1} parent=5 // pred_fallthru
        _
    $region6: #{tpu_custom_call.1} parent=1 // loop_footer
      %s20 = sadd.s32 1, %s16
    $region7: #{tpu_custom_call.1} parent=1 // loop_footer_branch
      %15 = sbr.rel target = $region3
    $region8: #{tpu_custom_call.1} parent=1 // loop_exit
      _
    %328 = vsyncpa [#allocation3], 1
    %s329 = scalar_lea.sflag [#allocation3], 1
    %330 = vsyncpa %s329, 1
    %331 = vsyncpa [#allocation6], 1
    %332 = vsyncpa [#allocation4], 1
    %s333 = scalar_lea.sflag [#allocation4], 1
    %334 = vsyncpa %s333, 1

</llo_original>
